<compile_context>
chip_gen: v7x
topology: tpu7x:2x2x1
jax: 0.10.0
libtpu: 0.0.40
codegen_flags: <defaults>
</compile_context>

<pallas_src>
import functools
import math

import jax
import jax.numpy as jnp
from jax import lax
from jax.experimental import pallas as pl
from jax.experimental.pallas import tpu as pltpu


def _round_up(v, m):
    return ((v + m - 1) // m) * m


def _pick_images_per_step(n, per_img_bytes, fixed_bytes,
                          target_steps=4, vmem_budget=24 * 1024 * 1024):
    """Largest divisor of n keeping >= min(target_steps, n) grid steps and fitting
    the double-buffered per-step footprint into a conservative VMEM budget."""
    best = 1
    for nb in range(1, n + 1):
        if n % nb:
            continue
        if n // nb < min(target_steps, n):
            continue
        if nb * per_img_bytes + fixed_bytes > vmem_budget:
            continue
        best = max(best, nb)
    return best


# ----------------------------------------------------------------------------
# Pallas kernel: fused dilated KxK conv (single stacked-tap MXU dot per chunk)
#                + bias + LeakyReLU
# ----------------------------------------------------------------------------
def _conv_lrelu_kernel(x_ref, w_ref, b_ref, o_ref, tap_ref, *,
                       tap_offsets, chunks, cin_p, slope):
    # x_ref  : (NB, CinP, Lp)     bf16  flat halo-padded images (row pitch w_row)
    # w_ref  : (CoutP, K*K*CinP)  f32   pre-packed per-tap weights (grid-resident)
    # b_ref  : (CoutP, 1)         f32   bias column (grid-resident)
    # o_ref  : (NB, CoutP, Mpad)  f32   lane-dense flat output
    # tap_ref: (K*K*CinP, MC)     f32   VMEM scratch: stacked shifted taps
    nb = o_ref.shape[0]
    w = w_ref[...]                         # hoisted out of the loops (tiny)
    bias = b_ref[...]
    for b in range(nb):                    # static unroll over images in the block
        for c0, sz in chunks:              # static unroll over lane chunks (128-mult)
            # VMEM-local "im2col": stack the K*K dilated taps (static lane-offset
            # slices of the flat padded image) under one contraction axis.
            for t, off in enumerate(tap_offsets):
                tap_ref[t * cin_p:(t + 1) * cin_p, :sz] = (
                    x_ref[b, :, off + c0: off + c0 + sz].astype(jnp.float32))
            # Single MXU contraction over all taps & channels (K = K*K*CinP).
            acc = jnp.dot(w, tap_ref[:, :sz], preferred_element_type=jnp.float32)
            acc = acc + bias                          # bias epilogue (f32)
            acc = jnp.maximum(acc, slope * acc)       # LeakyReLU(slope), slope < 1
            o_ref[b, :, c0:c0 + sz] = acc.astype(o_ref.dtype)


# ----------------------------------------------------------------------------
# One-time parameter prep (hoisted out of the forward hot path)
# ----------------------------------------------------------------------------
def prep_conv_direc_params(w, b):
    """torch Conv2d params -> kernel layout.
    w: (Cout, Cin, K, K), b: (Cout,)
    returns: w_packed (CoutP, K*K*CinP) f32 (values rounded to bf16),
             b_col (CoutP, 1) f32.
    Column t*CinP + ci of w_packed holds w[:, ci, dy, dx] with t = dy*K + dx,
    matching the tap-stack row order built inside the kernel."""
    cout, cin, k, _ = w.shape
    cout_p = _round_up(max(cout, 8), 8)
    cin_p = _round_up(max(cin, 8), 8)
    w_q = w.astype(jnp.bfloat16).astype(jnp.float32)      # bf16 precision policy
    w_t = jnp.transpose(w_q, (2, 3, 0, 1)).reshape(k * k, cout, cin)
    w_t = jnp.pad(w_t, ((0, 0), (0, 0), (0, cin_p - cin)))            # (kk,cout,cin_p)
    w_packed = jnp.transpose(w_t, (1, 0, 2)).reshape(cout, k * k * cin_p)
    w_packed = jnp.pad(w_packed, ((0, cout_p - cout), (0, 0)))        # (cout_p, kk*cin_p)
    b_col = jnp.pad(b.astype(jnp.float32), (0, cout_p - cout)).reshape(cout_p, 1)
    return w_packed, b_col


# ----------------------------------------------------------------------------
# ConvDirec.forward:  (LeakyReLU_0.2(dilated_conv2d(x)), None)
# ----------------------------------------------------------------------------
def conv_direc_forward(x, w_packed, b_col, h=None, *, kernel, dilation,
                       out_channels, slope=0.2, mc_max=2048):
    del h                                    # accepted & ignored, like the module
    n, cin, height, width = x.shape
    k, d = kernel, dilation
    cout_p, kkcin = w_packed.shape
    kk = k * k
    cin_p = kkcin // kk
    assert kkcin == kk * cin_p and cin <= cin_p and out_channels <= cout_p

    pad = int(d * (k - 1) / 2)               # same (floor) formula as the torch module
    h_out = height + 2 * pad - d * (k - 1)
    w_out = width + 2 * pad - d * (k - 1)

    # Flat row-major layout of the halo-padded image: row pitch = padded width
    # (no pitch inflation); only the flattened length is rounded to 128 lanes.
    w_row = width + 2 * pad
    h_pad = height + 2 * pad
    m_valid = h_out * w_row
    m_pad = _round_up(m_valid, 128)
    off_max = (k - 1) * d * w_row + (k - 1) * d        # flat offset of the last tap
    tail = off_max + m_pad - h_pad * w_row             # flat elems needed past the halo
    extra_rows = -(-max(tail, 0) // w_row)
    h_alloc = h_pad + extra_rows
    lp = h_alloc * w_row

    # Single pad (channels -> CinP, halo rows + flat-tail rows, halo cols) on the
    # bf16 activations, then a free contiguous reshape.  No HBM im2col.
    xf = jnp.pad(x.astype(jnp.bfloat16),
                 ((0, 0), (0, cin_p - cin),
                  (pad, pad + extra_rows), (pad, w_row - width - pad)))
    xf = xf.reshape(n, cin_p, lp)

    # Flat offset of tap (dy, dx); ordering matches prep_conv_direc_params.
    tap_offsets = tuple(dy * d * w_row + dx * d
                        for dy in range(k) for dx in range(k))

    # Lane chunking (all chunks are multiples of 128 since m_pad is).
    mc = min(mc_max, m_pad)
    chunks = tuple((c0, min(mc, m_pad - c0)) for c0 in range(0, m_pad, mc))
    scratch_bytes = kk * cin_p * mc * 4

    # Images per grid step: keep >= min(4, N) steps (pipeline depth, v7x 2 TCs)
    # while fitting the double-buffered blocks in a conservative VMEM budget.
    # TODO(synk): for very large images add halo'd spatial row-tiling (manual DMA)
    # so the full padded image need not reside in VMEM per step (v7x 64 MiB VMEM).
    per_img_bytes = 2 * (cin_p * lp * 2) + 2 * (cout_p * m_pad * 4)
    fixed_bytes = scratch_bytes + 2 * int(w_packed.size) * 4 + 2 * cout_p * 4
    nb = _pick_images_per_step(n, per_img_bytes, fixed_bytes)
    grid = (n // nb,)
    vmem_limit = int(min(max(nb * per_img_bytes + fixed_bytes + (4 << 20),
                             32 * 1024 * 1024), 96 * 1024 * 1024))

    kern = functools.partial(_conv_lrelu_kernel, tap_offsets=tap_offsets,
                             chunks=chunks, cin_p=cin_p, slope=slope)
    out_flat = pl.pallas_call(
        kern,
        out_shape=jax.ShapeDtypeStruct((n, cout_p, m_pad), jnp.float32),
        grid=grid,
        in_specs=[
            pl.BlockSpec((nb, cin_p, lp), lambda i: (i, 0, 0)),
            pl.BlockSpec((cout_p, kkcin), lambda i: (0, 0)),    # resident weights
            pl.BlockSpec((cout_p, 1), lambda i: (0, 0)),        # resident bias
        ],
        out_specs=pl.BlockSpec((nb, cout_p, m_pad), lambda i: (i, 0, 0)),
        scratch_shapes=[pltpu.VMEM((kk * cin_p, mc), jnp.float32)],
        compiler_params=pltpu.CompilerParams(
            dimension_semantics=("parallel",),
            vmem_limit_bytes=vmem_limit),
    )(xf, w_packed, b_col)

    # Drop the Cout padding, the lane-rounding tail and the pitch columns.
    out = out_flat[:, :out_channels, :m_valid]
    out = out.reshape(n, out_channels, h_out, w_row)[:, :, :, :w_out]
    return out, None


# ----------------------------------------------------------------------------
if __name__ == "__main__":
    key = jax.random.PRNGKey(0)
    kx, kw, kb = jax.random.split(key, 3)

    # ConvDirec(inp_dim=4, oup_dim=8, kernel=3, dilation=2), x: (2, 4, 16, 16)
    N, CIN, H, W = 2, 4, 16, 16
    COUT, K, DIL = 8, 3, 2
    SLOPE = 0.2

    x = jax.random.normal(kx, (N, CIN, H, W), jnp.float32)
    fan_in = CIN * K * K
    bound = 1.0 / math.sqrt(fan_in)
    w = jax.random.uniform(kw, (COUT, CIN, K, K), jnp.float32, -bound, bound)
    b = jax.random.uniform(kb, (COUT,), jnp.float32, -bound, bound)

    # one-time prep (weight re-layout + bf16 rounding hoisted out of the forward)
    w_packed, b_col = prep_conv_direc_params(w, b)

    fwd = jax.jit(functools.partial(conv_direc_forward, kernel=K, dilation=DIL,
                                    out_channels=COUT, slope=SLOPE))
    out, hidden = fwd(x, w_packed, b_col)
    jax.block_until_ready(out)

    assert hidden is None
    assert out.shape == (N, COUT, H, W), out.shape   # "same" padding with K=3

    # Reference at the kernel's precision policy (x and w rounded to bf16,
    # f32 accumulation).
    pad = int(DIL * (K - 1) / 2)
    x_q = x.astype(jnp.bfloat16).astype(jnp.float32)
    w_q = w.astype(jnp.bfloat16).astype(jnp.float32)
    ref = lax.conv_general_dilated(
        x_q, w_q, window_strides=(1, 1),
        padding=((pad, pad), (pad, pad)), rhs_dilation=(DIL, DIL),
        dimension_numbers=("NCHW", "OIHW", "NCHW"),
        preferred_element_type=jnp.float32) + b[None, :, None, None]
    ref = jnp.where(ref >= 0, ref, SLOPE * ref)

    err = float(jnp.max(jnp.abs(out - ref)))
    assert err < 1e-3, f"max abs error vs reference: {err}"
    assert bool(jnp.all(jnp.isfinite(out)))
    print("KERNEL_OK")
</pallas_src>

<mosaic_0001>
module attributes {stable_mosaic.version = 11 : i64} {
  func.func @_conv_lrelu_kernel(%arg0: i32, %arg1: memref<1x8x480xbf16, #tpu.memory_space<vmem>>, %arg2: memref<8x72xf32, #tpu.memory_space<vmem>>, %arg3: memref<8x1xf32, #tpu.memory_space<vmem>>, %arg4: memref<1x8x384xf32, #tpu.memory_space<vmem>>, %arg5: memref<72x384xf32, #tpu.memory_space<vmem>>) attributes {dimension_semantics = [#tpu.dimension_semantics<parallel>], iteration_bounds = array<i64: 2>, scalar_prefetch = 0 : i64, scratch_operands = 1 : i64, tpu.core_type = #tpu.core_type<tc>, window_params = [{transform_indices = @transform_0, window_bounds = array<i64: 1, 8, 480>}, {pipeline_mode = #tpu.pipeline_mode<synchronous>, transform_indices = @transform_1, window_bounds = array<i64: 8, 72>}, {pipeline_mode = #tpu.pipeline_mode<synchronous>, transform_indices = @transform_2, window_bounds = array<i64: 8, 1>}, {transform_indices = @transform_3, window_bounds = array<i64: 1, 8, 384>}]} {
    %c0 = arith.constant 0 : index
    %c0_0 = arith.constant 0 : index
    %0 = vector.load %arg2[%c0, %c0_0] : memref<8x72xf32, #tpu.memory_space<vmem>>, vector<8x72xf32>
    %c0_1 = arith.constant 0 : index
    %c0_2 = arith.constant 0 : index
    %1 = vector.load %arg3[%c0_1, %c0_2] : memref<8x1xf32, #tpu.memory_space<vmem>>, vector<8x1xf32>
    %c0_3 = arith.constant 0 : index
    %c0_4 = arith.constant 0 : index
    %c0_5 = arith.constant 0 : index
    %2 = vector.load %arg1[%c0_3, %c0_4, %c0_5] : memref<1x8x480xbf16, #tpu.memory_space<vmem>>, vector<1x8x384xbf16>
    %3 = vector.shape_cast %2 : vector<1x8x384xbf16> to vector<8x384xbf16>
    %4 = arith.extf %3 : vector<8x384xbf16> to vector<8x384xf32>
    %c0_6 = arith.constant 0 : index
    %c0_7 = arith.constant 0 : index
    %5 = vector.load %arg5[%c0_6, %c0_7] : memref<72x384xf32, #tpu.memory_space<vmem>>, vector<8x384xf32>
    tpu.vector_store %arg5[%c0_6, %c0_7], %4 {strides = array<i32>} : memref<72x384xf32, #tpu.memory_space<vmem>>, vector<8x384xf32>,
    %c0_8 = arith.constant 0 : index
    %c0_9 = arith.constant 0 : index
    %c2 = arith.constant 2 : index
    %6 = vector.load %arg1[%c0_8, %c0_9, %c2] : memref<1x8x480xbf16, #tpu.memory_space<vmem>>, vector<1x8x384xbf16>
    %7 = vector.shape_cast %6 : vector<1x8x384xbf16> to vector<8x384xbf16>
    %8 = arith.extf %7 : vector<8x384xbf16> to vector<8x384xf32>
    %c8 = arith.constant 8 : index
    %c0_10 = arith.constant 0 : index
    %9 = vector.load %arg5[%c8, %c0_10] : memref<72x384xf32, #tpu.memory_space<vmem>>, vector<8x384xf32>
    tpu.vector_store %arg5[%c8, %c0_10], %8 {strides = array<i32>} : memref<72x384xf32, #tpu.memory_space<vmem>>, vector<8x384xf32>,
    %c0_11 = arith.constant 0 : index
    %c0_12 = arith.constant 0 : index
    %c4 = arith.constant 4 : index
    %10 = vector.load %arg1[%c0_11, %c0_12, %c4] : memref<1x8x480xbf16, #tpu.memory_space<vmem>>, vector<1x8x384xbf16>
    %11 = vector.shape_cast %10 : vector<1x8x384xbf16> to vector<8x384xbf16>
    %12 = arith.extf %11 : vector<8x384xbf16> to vector<8x384xf32>
    %c16 = arith.constant 16 : index
    %c0_13 = arith.constant 0 : index
    %13 = vector.load %arg5[%c16, %c0_13] : memref<72x384xf32, #tpu.memory_space<vmem>>, vector<8x384xf32>
    tpu.vector_store %arg5[%c16, %c0_13], %12 {strides = array<i32>} : memref<72x384xf32, #tpu.memory_space<vmem>>, vector<8x384xf32>,
    %c0_14 = arith.constant 0 : index
    %c0_15 = arith.constant 0 : index
    %c40 = arith.constant 40 : index
    %14 = vector.load %arg1[%c0_14, %c0_15, %c40] : memref<1x8x480xbf16, #tpu.memory_space<vmem>>, vector<1x8x384xbf16>
    %15 = vector.shape_cast %14 : vector<1x8x384xbf16> to vector<8x384xbf16>
    %16 = arith.extf %15 : vector<8x384xbf16> to vector<8x384xf32>
    %c24 = arith.constant 24 : index
    %c0_16 = arith.constant 0 : index
    %17 = vector.load %arg5[%c24, %c0_16] : memref<72x384xf32, #tpu.memory_space<vmem>>, vector<8x384xf32>
    tpu.vector_store %arg5[%c24, %c0_16], %16 {strides = array<i32>} : memref<72x384xf32, #tpu.memory_space<vmem>>, vector<8x384xf32>,
    %c0_17 = arith.constant 0 : index
    %c0_18 = arith.constant 0 : index
    %c42 = arith.constant 42 : index
    %18 = vector.load %arg1[%c0_17, %c0_18, %c42] : memref<1x8x480xbf16, #tpu.memory_space<vmem>>, vector<1x8x384xbf16>
    %19 = vector.shape_cast %18 : vector<1x8x384xbf16> to vector<8x384xbf16>
    %20 = arith.extf %19 : vector<8x384xbf16> to vector<8x384xf32>
    %c32 = arith.constant 32 : index
    %c0_19 = arith.constant 0 : index
    %21 = vector.load %arg5[%c32, %c0_19] : memref<72x384xf32, #tpu.memory_space<vmem>>, vector<8x384xf32>
    tpu.vector_store %arg5[%c32, %c0_19], %20 {strides = array<i32>} : memref<72x384xf32, #tpu.memory_space<vmem>>, vector<8x384xf32>,
    %c0_20 = arith.constant 0 : index
    %c0_21 = arith.constant 0 : index
    %c44 = arith.constant 44 : index
    %22 = vector.load %arg1[%c0_20, %c0_21, %c44] : memref<1x8x480xbf16, #tpu.memory_space<vmem>>, vector<1x8x384xbf16>
    %23 = vector.shape_cast %22 : vector<1x8x384xbf16> to vector<8x384xbf16>
    %24 = arith.extf %23 : vector<8x384xbf16> to vector<8x384xf32>
    %c40_22 = arith.constant 40 : index
    %c0_23 = arith.constant 0 : index
    %25 = vector.load %arg5[%c40_22, %c0_23] : memref<72x384xf32, #tpu.memory_space<vmem>>, vector<8x384xf32>
    tpu.vector_store %arg5[%c40_22, %c0_23], %24 {strides = array<i32>} : memref<72x384xf32, #tpu.memory_space<vmem>>, vector<8x384xf32>,
    %c0_24 = arith.constant 0 : index
    %c0_25 = arith.constant 0 : index
    %c80 = arith.constant 80 : index
    %26 = vector.load %arg1[%c0_24, %c0_25, %c80] : memref<1x8x480xbf16, #tpu.memory_space<vmem>>, vector<1x8x384xbf16>
    %27 = vector.shape_cast %26 : vector<1x8x384xbf16> to vector<8x384xbf16>
    %28 = arith.extf %27 : vector<8x384xbf16> to vector<8x384xf32>
    %c48 = arith.constant 48 : index
    %c0_26 = arith.constant 0 : index
    %29 = vector.load %arg5[%c48, %c0_26] : memref<72x384xf32, #tpu.memory_space<vmem>>, vector<8x384xf32>
    tpu.vector_store %arg5[%c48, %c0_26], %28 {strides = array<i32>} : memref<72x384xf32, #tpu.memory_space<vmem>>, vector<8x384xf32>,
    %c0_27 = arith.constant 0 : index
    %c0_28 = arith.constant 0 : index
    %c82 = arith.constant 82 : index
    %30 = vector.load %arg1[%c0_27, %c0_28, %c82] : memref<1x8x480xbf16, #tpu.memory_space<vmem>>, vector<1x8x384xbf16>
    %31 = vector.shape_cast %30 : vector<1x8x384xbf16> to vector<8x384xbf16>
    %32 = arith.extf %31 : vector<8x384xbf16> to vector<8x384xf32>
    %c56 = arith.constant 56 : index
    %c0_29 = arith.constant 0 : index
    %33 = vector.load %arg5[%c56, %c0_29] : memref<72x384xf32, #tpu.memory_space<vmem>>, vector<8x384xf32>
    tpu.vector_store %arg5[%c56, %c0_29], %32 {strides = array<i32>} : memref<72x384xf32, #tpu.memory_space<vmem>>, vector<8x384xf32>,
    %c0_30 = arith.constant 0 : index
    %c0_31 = arith.constant 0 : index
    %c84 = arith.constant 84 : index
    %34 = vector.load %arg1[%c0_30, %c0_31, %c84] : memref<1x8x480xbf16, #tpu.memory_space<vmem>>, vector<1x8x384xbf16>
    %35 = vector.shape_cast %34 : vector<1x8x384xbf16> to vector<8x384xbf16>
    %36 = arith.extf %35 : vector<8x384xbf16> to vector<8x384xf32>
    %c64 = arith.constant 64 : index
    %c0_32 = arith.constant 0 : index
    %37 = vector.load %arg5[%c64, %c0_32] : memref<72x384xf32, #tpu.memory_space<vmem>>, vector<8x384xf32>
    tpu.vector_store %arg5[%c64, %c0_32], %36 {strides = array<i32>} : memref<72x384xf32, #tpu.memory_space<vmem>>, vector<8x384xf32>,
    %c0_33 = arith.constant 0 : index
    %c0_34 = arith.constant 0 : index
    %38 = vector.load %arg5[%c0_33, %c0_34] : memref<72x384xf32, #tpu.memory_space<vmem>>, vector<72x384xf32>
    %cst = arith.constant dense<0.000000e+00> : vector<8x384xf32>
    %39 = tpu.matmul %0, %38, %cst {dimension_numbers = #tpu.dot_dimension_numbers<[1], [0], [0], [1], [0, 0, 1, 1], [], []>} : vector<8x72xf32>, vector<72x384xf32>, vector<8x384xf32> -> vector<8x384xf32>
    %40 = vector.broadcast %1 : vector<8x1xf32> to vector<8x384xf32>
    %41 = arith.addf %39, %40 : vector<8x384xf32>
    %cst_35 = arith.constant 2.000000e-01 : f32
    %42 = vector.broadcast %cst_35 : f32 to vector<8x384xf32>
    %43 = arith.mulf %42, %41 : vector<8x384xf32>
    %44 = arith.maximumf %41, %43 : vector<8x384xf32>
    %c0_36 = arith.constant 0 : index
    %c0_37 = arith.constant 0 : index
    %c0_38 = arith.constant 0 : index
    %45 = vector.load %arg4[%c0_36, %c0_37, %c0_38] : memref<1x8x384xf32, #tpu.memory_space<vmem>>, vector<1x8x384xf32>
    %46 = vector.shape_cast %45 : vector<1x8x384xf32> to vector<8x384xf32>
    %47 = vector.shape_cast %44 : vector<8x384xf32> to vector<1x8x384xf32>
    tpu.vector_store %arg4[%c0_36, %c0_37, %c0_38], %47 {strides = array<i32>} : memref<1x8x384xf32, #tpu.memory_space<vmem>>, vector<1x8x384xf32>,
    return
  }
  func.func @transform_0(%arg0: i32) -> (i32, i32, i32) {
    %c0_i32 = arith.constant 0 : i32
    %c0_i32_0 = arith.constant 0 : i32
    %c0_i32_1 = arith.constant 0 : i32
    return %arg0, %c0_i32, %c0_i32_0 : i32, i32, i32
  }
  func.func @transform_1(%arg0: i32) -> (i32, i32) {
    %c0_i32 = arith.constant 0 : i32
    %c0_i32_0 = arith.constant 0 : i32
    %c0_i32_1 = arith.constant 0 : i32
    return %c0_i32, %c0_i32_0 : i32, i32
  }
  func.func @transform_2(%arg0: i32) -> (i32, i32) {
    %c0_i32 = arith.constant 0 : i32
    %c0_i32_0 = arith.constant 0 : i32
    %c0_i32_1 = arith.constant 0 : i32
    return %c0_i32, %c0_i32_0 : i32, i32
  }
  func.func @transform_3(%arg0: i32) -> (i32, i32, i32) {
    %c0_i32 = arith.constant 0 : i32
    %c0_i32_0 = arith.constant 0 : i32
    %c0_i32_1 = arith.constant 0 : i32
    return %arg0, %c0_i32, %c0_i32_0 : i32, i32, i32
  }
}

</mosaic_0001>

<llo_original>
// kernel: conv_direc_forward.1
$region0: #{conv_direc_forward.1}
  #allocation0 [shape = 'u32[]', space=smem, size = 0x4, offset = 0x4, fixed_abs, tag = 'smem constant byte address 0x4 - core index']
  #allocation1 [shape = 'u32[144,128]{1,0:T(1,128)}', space=vmem, size = 0x12000, scoped, tag = 'internal scratch']
  #allocation2 [shape = 'f32[72,384]{1,0:T(8,128)}', space=vmem, size = 0x1b000, scoped, tag = 'scratch operand']
  %s0 = inlined_call_operand.vmem [shape: bf16[2,8,480], index: 0, kind: input, shape index: {}]
  %s1 = inlined_call_operand.vmem [shape: f32[8,72], index: 1, kind: input, shape index: {}]
  %s2 = inlined_call_operand.vmem [shape: f32[8,1], index: 2, kind: input, shape index: {}]
  %s3 = inlined_call_operand.vmem [shape: f32[2,8,384], index: 3, kind: output, shape index: {}]
  %s4 = sld [smem:[#allocation0]]
  $region45: #{conv_direc_forward.1} parent=0
    _
  %s6 = ssub.s32 1, %s4
  %s7 = scalar_select 0, %s6, %s4
  loop: start=0, step=1, limit=4
  $region2: #{conv_direc_forward.1} parent=0 // loop_pre_header
    _
  $region3: #{conv_direc_forward.1} parent=0 // loop_header
    %s9 = sphi 0, %s13
    %p10 = scmp.ge.s32.totalorder %s9, 4
    %s19 = sphi 0, %s21
    %s22 = sphi 0, %s19
    %s23 = sphi 0, %s22
    %s39 = sphi 0, %s23
    %s43 = sphi 0, %s43
    %s45 = sphi 0, %s43
    %s46 = sphi 0, %s45
    %s60 = sphi 0, %s46
    %s64 = sphi 0, %s64
    %s66 = sphi 0, %s64
    %s67 = sphi 0, %s66
    %s81 = sphi 0, %s67
    %s87 = sphi 0, %s89
    %s90 = sphi 0, %s87
    %s91 = sphi 0, %s90
    %s107 = sphi 0, %s91
  $region4: #{conv_direc_forward.1} parent=0 // loop_header_branch
    %12 = sbr.rel (%p10) target = $region8
  $region5: #{conv_direc_forward.1} parent=0 // loop_body
    %s14 = ssub.s32 %s9, 1
    %s15 = ssub.s32 %s9, 2
    %s16 = sadd.s32 %s9, 1
    %s17 = ssub.s32 %s9, %s16
    %p18 = scmp.eq.s32.totalorder %s17, 0
    %s20 = sadd.s32 %s19, 1
    %s21 = scalar_select %p18, %s19, %s20
    %p24 = pneg %p18
    %p25 = scmp.eq.s32.totalorder %s9, 1
    %p26 = por %p24, %p25
    %p27 = scmp.ne.s32.totalorder %s19, %s22
    %p28 = scmp.eq.s32.totalorder %s9, 0
    %p29 = por %p27, %p28
    %p30 = scmp.ne.s32.totalorder %s19, %s22
    %p31 = scmp.eq.s32.totalorder %s14, 1
    %p32 = por %p30, %p31
    %p33 = scmp.ne.s32.totalorder %s22, %s23
    %p34 = scmp.eq.s32.totalorder %s14, 0
    %p35 = por %p33, %p34
    %p36 = scmp.ne.s32.totalorder %s22, %s23
    %p37 = scmp.eq.s32.totalorder %s15, 1
    %p38 = por %p36, %p37
    %p40 = scmp.ne.s32.totalorder %s23, %s39
    %p41 = scmp.eq.s32.totalorder %s15, 0
    %p42 = por %p40, %p41
    %s44 = sadd.s32 %s43, 1
    %p47 = scmp.eq.s32.totalorder %s9, 1
    %p48 = scmp.ne.s32.totalorder %s43, %s45
    %p49 = scmp.eq.s32.totalorder %s9, 0
    %p50 = por %p48, %p49
    %p51 = scmp.ne.s32.totalorder %s43, %s45
    %p52 = scmp.eq.s32.totalorder %s14, 1
    %p53 = por %p51, %p52
    %p54 = scmp.ne.s32.totalorder %s45, %s46
    %p55 = scmp.eq.s32.totalorder %s14, 0
    %p56 = por %p54, %p55
    %p57 = scmp.ne.s32.totalorder %s45, %s46
    %p58 = scmp.eq.s32.totalorder %s15, 1
    %p59 = por %p57, %p58
    %p61 = scmp.ne.s32.totalorder %s46, %s60
    %p62 = scmp.eq.s32.totalorder %s15, 0
    %p63 = por %p61, %p62
    %s65 = sadd.s32 %s64, 1
    %p68 = scmp.eq.s32.totalorder %s9, 1
    %p69 = scmp.ne.s32.totalorder %s64, %s66
    %p70 = scmp.eq.s32.totalorder %s9, 0
    %p71 = por %p69, %p70
    %p72 = scmp.ne.s32.totalorder %s64, %s66
    %p73 = scmp.eq.s32.totalorder %s14, 1
    %p74 = por %p72, %p73
    %p75 = scmp.ne.s32.totalorder %s66, %s67
    %p76 = scmp.eq.s32.totalorder %s14, 0
    %p77 = por %p75, %p76
    %p78 = scmp.ne.s32.totalorder %s66, %s67
    %p79 = scmp.eq.s32.totalorder %s15, 1
    %p80 = por %p78, %p79
    %p82 = scmp.ne.s32.totalorder %s67, %s81
    %p83 = scmp.eq.s32.totalorder %s15, 0
    %p84 = por %p82, %p83
    %s85 = ssub.s32 %s9, %s16
    %p86 = scmp.eq.s32.totalorder %s85, 0
    %s88 = sadd.s32 %s87, 1
    %s89 = scalar_select %p86, %s87, %s88
    %p92 = pneg %p86
    %p93 = scmp.eq.s32.totalorder %s9, 1
    %p94 = por %p92, %p93
    %p95 = scmp.ne.s32.totalorder %s87, %s90
    %p96 = scmp.eq.s32.totalorder %s9, 0
    %p97 = por %p95, %p96
    %p98 = scmp.ne.s32.totalorder %s87, %s90
    %p99 = scmp.eq.s32.totalorder %s14, 1
    %p100 = por %p98, %p99
    %p101 = scmp.ne.s32.totalorder %s90, %s91
    %p102 = scmp.eq.s32.totalorder %s14, 0
    %p103 = por %p101, %p102
    %p104 = scmp.ne.s32.totalorder %s90, %s91
    %p105 = scmp.eq.s32.totalorder %s15, 1
    %p106 = por %p104, %p105
    %p108 = scmp.ne.s32.totalorder %s91, %s107
    %p109 = scmp.eq.s32.totalorder %s15, 0
    %p110 = por %p108, %p109
    %p111 = scmp.le.s32.totalorder 1, %s9
    %p112 = scmp.lt.s32.totalorder %s9, 3
    %p113 = pnand %p111, %p112
    %p114 = pneg %p113
    // Predicated region
    $region9: #{conv_direc_forward.1} parent=5 // pred_check
      _
    $region10: #{conv_direc_forward.1} parent=5 // pred_check_branch
      %116 = sbr.rel (%p113) target = $region12
    $region11: #{conv_direc_forward.1} parent=5 // pred_region
      %s117 = ssub.s32 %s9, 1
      // Predicated region
      $region13: #{conv_direc_forward.1} parent=11 // pred_check
        %p118 = pneg %p56
      $region14: #{conv_direc_forward.1} parent=11 // pred_check_branch
        %120 = sbr.rel (%p118) target = $region16
      $region15: #{conv_direc_forward.1} parent=11 // pred_region
        _
      $region16: #{conv_direc_forward.1} parent=11 // pred_fallthru
        _
      // Predicated region
      $region17: #{conv_direc_forward.1} parent=11 // pred_check
        %p121 = pneg %p77
      $region18: #{conv_direc_forward.1} parent=11 // pred_check_branch
        %123 = sbr.rel (%p121) target = $region20
      $region19: #{conv_direc_forward.1} parent=11 // pred_region
        _
      $region20: #{conv_direc_forward.1} parent=11 // pred_fallthru
        _
    $region12: #{conv_direc_forward.1} parent=5 // pred_fallthru
      _
    %p124 = scmp.lt.s32.totalorder %s9, 2
    // Predicated region
    $region21: #{conv_direc_forward.1} parent=5 // pred_check
      %p125 = pneg %p124
    $region22: #{conv_direc_forward.1} parent=5 // pred_check_branch
      %127 = sbr.rel (%p125) target = $region24
    $region23: #{conv_direc_forward.1} parent=5 // pred_region
      // Predicated region
      $region25: #{conv_direc_forward.1} parent=23 // pred_check
        %p128 = pneg %p29
      $region26: #{conv_direc_forward.1} parent=23 // pred_check_branch
        %130 = sbr.rel (%p128) target = $region28
      $region27: #{conv_direc_forward.1} parent=23 // pred_region
        %p131 = scmp.lt.s32.totalorder %s9, 1
        %s132 = scalar_select %p131, %s9, 1
        %s133 = smul.addr %s132, 4
        %s134 = smul.addr %s133, 4
        %s135 = scalar_lea.vmem %s0, %s134
      $region28: #{conv_direc_forward.1} parent=23 // pred_fallthru
        _
    $region24: #{conv_direc_forward.1} parent=5 // pred_fallthru
      _
    %p136 = scmp.le.s32.totalorder 1, %s9
    %p137 = scmp.lt.s32.totalorder %s9, 3
    %p138 = pnand %p136, %p137
    %p139 = pneg %p138
    // Predicated region
    $region29: #{conv_direc_forward.1} parent=5 // pred_check
      _
    $region30: #{conv_direc_forward.1} parent=5 // pred_check_branch
      %141 = sbr.rel (%p138) target = $region32
    $region31: #{conv_direc_forward.1} parent=5 // pred_region
      %s142 = ssub.s32 %s9, 1
      %p143 = scmp.lt.s32.totalorder %s14, 1
      %s144 = scalar_select %p143, %s14, 1
      %s145 = smul.addr %s144, 4
      %s146 = smul.addr %s145, 4
      %s147 = scalar_lea.vmem %s0, %s146
      %p148 = pneg %p35
      %p149 = pneg %p32
      %p150 = pneg %p56
      %p151 = pneg %p53
      %p152 = pneg %p77
      %p153 = pneg %p74
      %p154 = pneg %p103
      %p155 = pneg %p100
      %p156 = scmp.lt.s32.totalorder %s14, 1
      %s157 = scalar_select %p156, %s14, 1
      %s158 = smul.addr %s157, 3
      %s159 = smul.addr %s158, 8
      %s160 = scalar_lea.vmem %s3, %s159
      %p161 = scmp.lt.s32.totalorder %s14, 1
      %s162 = scalar_select %p161, %s14, 1
      %s163 = smul.addr %s162, 4
      %s164 = smul.addr %s163, 4
      %s165 = scalar_lea.vmem %s0, %s164
      %p166 = scmp.lt.s32.totalorder %s14, 1
      %s167 = scalar_select %p166, %s14, 1
      %s168 = smul.addr %s167, 3
      %s169 = smul.addr %s168, 8
      %s170 = scalar_lea.vmem %s3, %s169
      %v171 = vld [vmem:[%s1] sm:$0xff]
      %v172 = vld [vmem:[%s2] sm:$0xff]
      %v173 = vld [vmem:[%s165] sm:$0xff]
      %v174 = vld [vmem:[%s165 + $0x8] sm:$0xf]
      %v175 = vunpack.c.l.bf16 %v173
      %v176 = vunpack.c.h.bf16 %v173
      %v177 = vunpack.c.l.bf16 %v174
      %178 = vst [vmem:[#allocation2] sm:$0xff] %v175
      %179 = vst [vmem:[#allocation2 + $0x8] sm:$0xff] %v176
      %180 = vst [vmem:[#allocation2 + $0x10] sm:$0xff] %v177
      %v181 = vld [vmem:[%s165] sm:$0xff]
      %v182 = vld [vmem:[%s165 + $0x8] sm:$0xff]
      %v183 = vunpack.c.l.bf16 %v181
      %v184 = vunpack.c.h.bf16 %v181
      %v185 = vunpack.c.l.bf16 %v182
      %v186 = vunpack.c.h.bf16 %v182
      %191 = vrot.lane.b32.xlu0 %v183, 126
      %v192 = vpop.permute.xlu0 %191
      %193 = vrot.lane.b32.xlu0 %v184, 126
      %v194 = vpop.permute.xlu0 %193
      %195 = vrot.lane.b32.xlu0 %v185, 126
      %v196 = vpop.permute.xlu0 %195
      %197 = vrot.lane.b32.xlu0 %v186, 126
      %v198 = vpop.permute.xlu0 %197
      %vm199 = vcmask 1031168
      %v200 = vsel %vm199, %v192, %v194
      %v201 = vsel %vm199, %v194, %v196
      %v202 = vsel %vm199, %v196, %v198
      %206 = vst [vmem:[#allocation2 + $0x18] sm:$0xff] %v200
      %207 = vst [vmem:[#allocation2 + $0x20] sm:$0xff] %v201
      %208 = vst [vmem:[#allocation2 + $0x28] sm:$0xff] %v202
      %v209 = vld [vmem:[%s165] sm:$0xff]
      %v210 = vld [vmem:[%s165 + $0x8] sm:$0xff]
      %v211 = vunpack.c.l.bf16 %v209
      %v212 = vunpack.c.h.bf16 %v209
      %v213 = vunpack.c.l.bf16 %v210
      %v214 = vunpack.c.h.bf16 %v210
      %219 = vrot.lane.b32.xlu0 %v211, 124
      %v220 = vpop.permute.xlu0 %219
      %221 = vrot.lane.b32.xlu0 %v212, 124
      %v222 = vpop.permute.xlu0 %221
      %223 = vrot.lane.b32.xlu0 %v213, 124
      %v224 = vpop.permute.xlu0 %223
      %225 = vrot.lane.b32.xlu0 %v214, 124
      %v226 = vpop.permute.xlu0 %225
      %vm227 = vcmask 1014784
      %v228 = vsel %vm227, %v220, %v222
      %v229 = vsel %vm227, %v222, %v224
      %v230 = vsel %vm227, %v224, %v226
      %234 = vst [vmem:[#allocation2 + $0x30] sm:$0xff] %v228
      %235 = vst [vmem:[#allocation2 + $0x38] sm:$0xff] %v229
      %236 = vst [vmem:[#allocation2 + $0x40] sm:$0xff] %v230
      %v237 = vld [vmem:[%s165] sm:$0xff]
      %v238 = vld [vmem:[%s165 + $0x8] sm:$0xff]
      %v239 = vunpack.c.l.bf16 %v237
      %v240 = vunpack.c.h.bf16 %v237
      %v241 = vunpack.c.l.bf16 %v238
      %v242 = vunpack.c.h.bf16 %v238
      %247 = vrot.lane.b32.xlu0 %v239, 88
      %v248 = vpop.permute.xlu0 %247
      %249 = vrot.lane.b32.xlu0 %v240, 88
      %v250 = vpop.permute.xlu0 %249
      %251 = vrot.lane.b32.xlu0 %v241, 88
      %v252 = vpop.permute.xlu0 %251
      %253 = vrot.lane.b32.xlu0 %v242, 88
      %v254 = vpop.permute.xlu0 %253
      %vm255 = vcmask 719872
      %v256 = vsel %vm255, %v248, %v250
      %v257 = vsel %vm255, %v250, %v252
      %v258 = vsel %vm255, %v252, %v254
      %262 = vst [vmem:[#allocation2 + $0x48] sm:$0xff] %v256
      %263 = vst [vmem:[#allocation2 + $0x50] sm:$0xff] %v257
      %264 = vst [vmem:[#allocation2 + $0x58] sm:$0xff] %v258
      %v265 = vld [vmem:[%s165] sm:$0xff]
      %v266 = vld [vmem:[%s165 + $0x8] sm:$0xff]
      %v267 = vunpack.c.l.bf16 %v265
      %v268 = vunpack.c.h.bf16 %v265
      %v269 = vunpack.c.l.bf16 %v266
      %v270 = vunpack.c.h.bf16 %v266
      %275 = vrot.lane.b32.xlu0 %v267, 86
      %v276 = vpop.permute.xlu0 %275
      %277 = vrot.lane.b32.xlu0 %v268, 86
      %v278 = vpop.permute.xlu0 %277
      %279 = vrot.lane.b32.xlu0 %v269, 86
      %v280 = vpop.permute.xlu0 %279
      %281 = vrot.lane.b32.xlu0 %v270, 86
      %v282 = vpop.permute.xlu0 %281
      %vm283 = vcmask 703488
      %v284 = vsel %vm283, %v276, %v278
      %v285 = vsel %vm283, %v278, %v280
      %v286 = vsel %vm283, %v280, %v282
      %290 = vst [vmem:[#allocation2 + $0x60] sm:$0xff] %v284
      %291 = vst [vmem:[#allocation2 + $0x68] sm:$0xff] %v285
      %292 = vst [vmem:[#allocation2 + $0x70] sm:$0xff] %v286
      %v293 = vld [vmem:[%s165] sm:$0xff]
      %v294 = vld [vmem:[%s165 + $0x8] sm:$0xff]
      %v295 = vunpack.c.l.bf16 %v293
      %v296 = vunpack.c.h.bf16 %v293
      %v297 = vunpack.c.l.bf16 %v294
      %v298 = vunpack.c.h.bf16 %v294
      %303 = vrot.lane.b32.xlu0 %v295, 84
      %v304 = vpop.permute.xlu0 %303
      %305 = vrot.lane.b32.xlu0 %v296, 84
      %v306 = vpop.permute.xlu0 %305
      %307 = vrot.lane.b32.xlu0 %v297, 84
      %v308 = vpop.permute.xlu0 %307
      %309 = vrot.lane.b32.xlu0 %v298, 84
      %v310 = vpop.permute.xlu0 %309
      %vm311 = vcmask 687104
      %v312 = vsel %vm311, %v304, %v306
      %v313 = vsel %vm311, %v306, %v308
      %v314 = vsel %vm311, %v308, %v310
      %318 = vst [vmem:[#allocation2 + $0x78] sm:$0xff] %v312
      %319 = vst [vmem:[#allocation2 + $0x80] sm:$0xff] %v313
      %320 = vst [vmem:[#allocation2 + $0x88] sm:$0xff] %v314
      %v321 = vld [vmem:[%s165] sm:$0xff]
      %v322 = vld [vmem:[%s165 + $0x8] sm:$0xff]
      %v323 = vunpack.c.l.bf16 %v321
      %v324 = vunpack.c.h.bf16 %v321
      %v325 = vunpack.c.l.bf16 %v322
      %v326 = vunpack.c.h.bf16 %v322
      %331 = vrot.lane.b32.xlu0 %v323, 48
      %v332 = vpop.permute.xlu0 %331
      %333 = vrot.lane.b32.xlu0 %v324, 48
      %v334 = vpop.permute.xlu0 %333
      %335 = vrot.lane.b32.xlu0 %v325, 48
      %v336 = vpop.permute.xlu0 %335
      %337 = vrot.lane.b32.xlu0 %v326, 48
      %v338 = vpop.permute.xlu0 %337
      %vm339 = vcmask 392192
      %v340 = vsel %vm339, %v332, %v334
      %v341 = vsel %vm339, %v334, %v336
      %v342 = vsel %vm339, %v336, %v338
      %346 = vst [vmem:[#allocation2 + $0x90] sm:$0xff] %v340
      %347 = vst [vmem:[#allocation2 + $0x98] sm:$0xff] %v341
      %348 = vst [vmem:[#allocation2 + $0xa0] sm:$0xff] %v342
      %v349 = vld [vmem:[%s165] sm:$0xff]
      %v350 = vld [vmem:[%s165 + $0x8] sm:$0xff]
      %v351 = vunpack.c.l.bf16 %v349
      %v352 = vunpack.c.h.bf16 %v349
      %v353 = vunpack.c.l.bf16 %v350
      %v354 = vunpack.c.h.bf16 %v350
      %359 = vrot.lane.b32.xlu0 %v351, 46
      %v360 = vpop.permute.xlu0 %359
      %361 = vrot.lane.b32.xlu0 %v352, 46
      %v362 = vpop.permute.xlu0 %361
      %363 = vrot.lane.b32.xlu0 %v353, 46
      %v364 = vpop.permute.xlu0 %363
      %365 = vrot.lane.b32.xlu0 %v354, 46
      %v366 = vpop.permute.xlu0 %365
      %vm367 = vcmask 375808
      %v368 = vsel %vm367, %v360, %v362
      %v369 = vsel %vm367, %v362, %v364
      %v370 = vsel %vm367, %v364, %v366
      %374 = vst [vmem:[#allocation2 + $0xa8] sm:$0xff] %v368
      %375 = vst [vmem:[#allocation2 + $0xb0] sm:$0xff] %v369
      %376 = vst [vmem:[#allocation2 + $0xb8] sm:$0xff] %v370
      %v377 = vld [vmem:[%s165] sm:$0xff]
      %v378 = vld [vmem:[%s165 + $0x8] sm:$0xff]
      %v379 = vunpack.c.l.bf16 %v377
      %v380 = vunpack.c.h.bf16 %v377
      %v381 = vunpack.c.l.bf16 %v378
      %v382 = vunpack.c.h.bf16 %v378
      %387 = vrot.lane.b32.xlu0 %v379, 44
      %v388 = vpop.permute.xlu0 %387
      %389 = vrot.lane.b32.xlu0 %v380, 44
      %v390 = vpop.permute.xlu0 %389
      %391 = vrot.lane.b32.xlu0 %v381, 44
      %v392 = vpop.permute.xlu0 %391
      %393 = vrot.lane.b32.xlu0 %v382, 44
      %v394 = vpop.permute.xlu0 %393
      %vm395 = vcmask 359424
      %v396 = vsel %vm395, %v388, %v390
      %v397 = vsel %vm395, %v390, %v392
      %v398 = vsel %vm395, %v392, %v394
      %402 = vst [vmem:[#allocation2 + $0xc0] sm:$0xff] %v396
      %403 = vst [vmem:[#allocation2 + $0xc8] sm:$0xff] %v397
      %404 = vst [vmem:[#allocation2 + $0xd0] sm:$0xff] %v398
      %v405 = vld [vmem:[#allocation2] sm:$0xff]
      %v406 = vld [vmem:[#allocation2 + $0x8] sm:$0xff]
      %v407 = vld [vmem:[#allocation2 + $0x10] sm:$0xff]
      %v408 = vld [vmem:[#allocation2 + $0x18] sm:$0xff]
      %v409 = vld [vmem:[#allocation2 + $0x20] sm:$0xff]
      %v410 = vld [vmem:[#allocation2 + $0x28] sm:$0xff]
      %v411 = vld [vmem:[#allocation2 + $0x30] sm:$0xff]
      %v412 = vld [vmem:[#allocation2 + $0x38] sm:$0xff]
      %v413 = vld [vmem:[#allocation2 + $0x40] sm:$0xff]
      %v414 = vld [vmem:[#allocation2 + $0x48] sm:$0xff]
      %v415 = vld [vmem:[#allocation2 + $0x50] sm:$0xff]
      %v416 = vld [vmem:[#allocation2 + $0x58] sm:$0xff]
      %v417 = vld [vmem:[#allocation2 + $0x60] sm:$0xff]
      %v418 = vld [vmem:[#allocation2 + $0x68] sm:$0xff]
      %v419 = vld [vmem:[#allocation2 + $0x70] sm:$0xff]
      %v420 = vld [vmem:[#allocation2 + $0x78] sm:$0xff]
      %v421 = vld [vmem:[#allocation2 + $0x80] sm:$0xff]
      %v422 = vld [vmem:[#allocation2 + $0x88] sm:$0xff]
      %v423 = vld [vmem:[#allocation2 + $0x90] sm:$0xff]
      %v424 = vld [vmem:[#allocation2 + $0x98] sm:$0xff]
      %v425 = vld [vmem:[#allocation2 + $0xa0] sm:$0xff]
      %v426 = vld [vmem:[#allocation2 + $0xa8] sm:$0xff]
      %v427 = vld [vmem:[#allocation2 + $0xb0] sm:$0xff]
      %v428 = vld [vmem:[#allocation2 + $0xb8] sm:$0xff]
      %v429 = vld [vmem:[#allocation2 + $0xc0] sm:$0xff]
      %v430 = vld [vmem:[#allocation2 + $0xc8] sm:$0xff]
      %v431 = vld [vmem:[#allocation2 + $0xd0] sm:$0xff]
      %433 = vset.pattern.permute.xlu0 0
      %434 = vperm.xlu0 %433, %v172
      %v435 = vpop.permute.xlu0 %434
      %vm437 = vcmask 588800
      %v439 = vsel %vm437, %v171, 0
      %441 = vmatprep.subr.mxu0 %v406
      %442 = vmatpush1.msra.mxu0 %v405
      %443 = vmatprep.subr.mxu0 %v409
      %444 = vmatpush1.msra.mxu0 %v408
      %445 = vmatprep.subr.mxu0 %v412
      %446 = vmatpush1.msra.mxu0 %v411
      %447 = vmatprep.subr.mxu0 %v415
      %448 = vmatpush1.msra.mxu0 %v414
      %449 = vmatprep.subr.mxu0 %v418
      %450 = vmatpush1.msra.mxu0 %v417
      %451 = vmatprep.subr.mxu0 %v421
      %452 = vmatpush1.msra.mxu0 %v420
      %453 = vmatprep.subr.mxu0 %v424
      %454 = vmatpush1.msra.mxu0 %v423
      %455 = vmatprep.subr.mxu0 %v427
      %456 = vmatpush1.msra.mxu0 %v426
      %457 = vmatprep.subr.mxu0 %v430
      %458 = vmatpush1.msra.mxu0 %v429
      %459 = vmatprep.subr.mxu0 0.0
      %460 = vmatpush1.msra.mxu0 0.0
      %461 = vmatprep.subr.mxu0 0.0
      %462 = vmatpush1.msra.mxu0 0.0
      %463 = vmatprep.subr.mxu0 0.0
      %464 = vmatpush1.msra.mxu0 0.0
      %465 = vmatprep.subr.mxu0 0.0
      %466 = vmatpush1.msra.mxu0 0.0
      %467 = vmatprep.subr.mxu0 0.0
      %468 = vmatpush1.msra.mxu0 0.0
      %469 = vmatprep.subr.mxu0 0.0
      %470 = vmatpush1.msra.mxu0 0.0
      %471 = vmatprep.subr.mxu0 0.0
      %472 = vmatpush1.msra.mxu0 0.0
      %473 = vmatprep.subr.mxu0 0.0
      %474 = vmatpush1.msra.mxu0 0.0
      %475 = vmatprep.subr.mxu0 0.0
      %476 = vmatpush1.msra.mxu0 0.0
      %477 = vmatprep.subr.mxu0 0.0
      %478 = vmatpush1.msra.mxu0 0.0
      %479 = vmatprep.subr.mxu0 0.0
      %480 = vmatpush1.msra.mxu0 0.0
      %481 = vmatprep.subr.mxu0 0.0
      %482 = vmatpush1.msra.mxu0 0.0
      %483 = vmatprep.subr.mxu0 0.0
      %484 = vmatpush1.msra.mxu0 0.0
      %485 = vmatprep.subr.mxu0 0.0
      %486 = vmatpush1.msra.mxu0 0.0
      %487 = vmatprep.subr.mxu0 0.0
      %488 = vmatpush1.msra.mxu0 0.0
      %489 = vmatprep.subr.mxu0 0.0
      %490 = vmatpush1.msra.mxu0 0.0
      %491 = vmatprep.subr.mxu0 0.0
      %492 = vmatpush1.msra.mxu0 0.0
      %493 = vmatprep.subr.mxu0 0.0
      %494 = vmatpush1.msra.mxu0 0.0
      %495 = vmatprep.subr.mxu0 0.0
      %496 = vmatpush1.msra.mxu0 0.0
      %497 = vmatprep.subr.mxu0 0.0
      %498 = vmatpush1.msra.mxu0 0.0
      %499 = vmatprep.subr.mxu0 0.0
      %500 = vmatpush1.msra.mxu0 0.0
      %501 = vmatprep.subr.mxu0 0.0
      %502 = vmatpush1.msra.mxu0 0.0
      %503 = vmatprep.subr.mxu0 0.0
      %504 = vmatpush1.msra.mxu0 0.0
      %505 = vmatprep.mubr.f32.mxu0 0.0
      %506 = vmatmul.mubr.f32.gmra.mrb[0].mxu0 %v439
      %v507 = vpop.f32.mrb[0].mxu0
      %v508 = vadd.f32 %v435, %v507
      %v509 = vpop.f32.mrb[0].mxu0
      %v510 = vadd.f32 %v435, %v509
      %511 = vdwg.mxu0
      %512 = vmatprep.subr.mxu0 0.0
      %513 = vmatpush1.msra.mxu0 %v407
      %514 = vmatprep.subr.mxu0 0.0
      %515 = vmatpush1.msra.mxu0 %v410
      %516 = vmatprep.subr.mxu0 0.0
      %517 = vmatpush1.msra.mxu0 %v413
      %518 = vmatprep.subr.mxu0 0.0
      %519 = vmatpush1.msra.mxu0 %v416
      %520 = vmatprep.subr.mxu0 0.0
      %521 = vmatpush1.msra.mxu0 %v419
      %522 = vmatprep.subr.mxu0 0.0
      %523 = vmatpush1.msra.mxu0 %v422
      %524 = vmatprep.subr.mxu0 0.0
      %525 = vmatpush1.msra.mxu0 %v425
      %526 = vmatprep.subr.mxu0 0.0
      %527 = vmatpush1.msra.mxu0 %v428
      %528 = vmatprep.subr.mxu0 0.0
      %529 = vmatpush1.msra.mxu0 %v431
      %530 = vmatprep.subr.mxu0 0.0
      %531 = vmatpush1.msra.mxu0 0.0
      %532 = vmatprep.subr.mxu0 0.0
      %533 = vmatpush1.msra.mxu0 0.0
      %534 = vmatprep.subr.mxu0 0.0
      %535 = vmatpush1.msra.mxu0 0.0
      %536 = vmatprep.subr.mxu0 0.0
      %537 = vmatpush1.msra.mxu0 0.0
      %538 = vmatprep.subr.mxu0 0.0
      %539 = vmatpush1.msra.mxu0 0.0
      %540 = vmatprep.subr.mxu0 0.0
      %541 = vmatpush1.msra.mxu0 0.0
      %542 = vmatprep.subr.mxu0 0.0
      %543 = vmatpush1.msra.mxu0 0.0
      %544 = vmatprep.subr.mxu0 0.0
      %545 = vmatpush1.msra.mxu0 0.0
      %546 = vmatprep.subr.mxu0 0.0
      %547 = vmatpush1.msra.mxu0 0.0
      %548 = vmatprep.subr.mxu0 0.0
      %549 = vmatpush1.msra.mxu0 0.0
      %550 = vmatprep.subr.mxu0 0.0
      %551 = vmatpush1.msra.mxu0 0.0
      %552 = vmatprep.subr.mxu0 0.0
      %553 = vmatpush1.msra.mxu0 0.0
      %554 = vmatprep.subr.mxu0 0.0
      %555 = vmatpush1.msra.mxu0 0.0
      %556 = vmatprep.subr.mxu0 0.0
      %557 = vmatpush1.msra.mxu0 0.0
      %558 = vmatprep.subr.mxu0 0.0
      %559 = vmatpush1.msra.mxu0 0.0
      %560 = vmatprep.subr.mxu0 0.0
      %561 = vmatpush1.msra.mxu0 0.0
      %562 = vmatprep.subr.mxu0 0.0
      %563 = vmatpush1.msra.mxu0 0.0
      %564 = vmatprep.subr.mxu0 0.0
      %565 = vmatpush1.msra.mxu0 0.0
      %566 = vmatprep.subr.mxu0 0.0
      %567 = vmatpush1.msra.mxu0 0.0
      %568 = vmatprep.subr.mxu0 0.0
      %569 = vmatpush1.msra.mxu0 0.0
      %570 = vmatprep.subr.mxu0 0.0
      %571 = vmatpush1.msra.mxu0 0.0
      %572 = vmatprep.subr.mxu0 0.0
      %573 = vmatpush1.msra.mxu0 0.0
      %574 = vmatprep.subr.mxu0 0.0
      %575 = vmatpush1.msra.mxu0 0.0
      %576 = vmatprep.mubr.f32.mxu0 0.0
      %577 = vmatmul.mubr.f32.gmra.mrb[0].mxu0 %v439
      %v578 = vpop.f32.mrb[0].mxu0
      %v579 = vadd.f32 %v435, %v578
      %v580 = vpop.f32.mrb[0].mxu0
      %581 = vdwg.mxu0
      %v582 = vmul.f32 %v508, 0.2
      %v583 = vmul.f32 %v510, 0.2
      %v584 = vmul.f32 %v579, 0.2
      %v585 = vmax.f32 %v508, %v582
      %v586 = vmax.f32 %v510, %v583
      %v587 = vmax.f32 %v579, %v584
      %588 = vst [vmem:[%s170] sm:$0xff] %v585
      %589 = vst [vmem:[%s170 + $0x8] sm:$0xff] %v586
      %590 = vst [vmem:[%s170 + $0x10] sm:$0xff] %v587
      %p591 = scmp.lt.s32.totalorder %s14, 1
      %s592 = scalar_select %p591, %s14, 1
      %s593 = smul.addr %s592, 3
      %s594 = smul.addr %s593, 8
      %s595 = scalar_lea.vmem %s3, %s594
      // Predicated region
      $region33: #{conv_direc_forward.1} parent=31 // pred_check
        %p596 = pneg %p100
      $region34: #{conv_direc_forward.1} parent=31 // pred_check_branch
        %598 = sbr.rel (%p596) target = $region36
      $region35: #{conv_direc_forward.1} parent=31 // pred_region
        _
      $region36: #{conv_direc_forward.1} parent=31 // pred_fallthru
        _
    $region32: #{conv_direc_forward.1} parent=5 // pred_fallthru
      _
    %p599 = scmp.le.s32.totalorder 2, %s9
    // Predicated region
    $region37: #{conv_direc_forward.1} parent=5 // pred_check
      %p600 = pneg %p599
    $region38: #{conv_direc_forward.1} parent=5 // pred_check_branch
      %602 = sbr.rel (%p600) target = $region40
    $region39: #{conv_direc_forward.1} parent=5 // pred_region
      %s603 = ssub.s32 %s9, 2
      // Predicated region
      $region41: #{conv_direc_forward.1} parent=39 // pred_check
        %p604 = pneg %p106
      $region42: #{conv_direc_forward.1} parent=39 // pred_check_branch
        %606 = sbr.rel (%p604) target = $region44
      $region43: #{conv_direc_forward.1} parent=39 // pred_region
        %p607 = scmp.lt.s32.totalorder %s15, 1
        %s608 = scalar_select %p607, %s15, 1
        %s609 = smul.addr %s608, 3
        %s610 = smul.addr %s609, 8
        %s611 = scalar_lea.vmem %s3, %s610
      $region44: #{conv_direc_forward.1} parent=39 // pred_fallthru
        _
    $region40: #{conv_direc_forward.1} parent=5 // pred_fallthru
      _
  $region6: #{conv_direc_forward.1} parent=0 // loop_footer
    %s13 = sadd.s32 1, %s9
  $region7: #{conv_direc_forward.1} parent=0 // loop_footer_branch
    %8 = sbr.rel target = $region3
  $region8: #{conv_direc_forward.1} parent=0 // loop_exit
    _

</llo_original>
